<compile_context>
chip_gen: v7x
topology: tpu7x:2x2x1
jax: 0.10.0
libtpu: 0.0.40
codegen_flags: <defaults>
</compile_context>

<pallas_src>
import functools

import jax
import jax.numpy as jnp
import numpy as np
from jax.experimental import pallas as pl
from jax.experimental.pallas import tpu as pltpu


def _round_up(x, m):
    return (x + m - 1) // m * m


def _auc_pairs_kernel(col_ref, row_ref, out_ref, *, ti, tj, n_pad):
    """One (class, half, i-block) grid step.

    col_ref: (TI, 1)     f32  scores masked to -inf where target != 1 (pads too)
    row_ref: (1, N_pad)  f32  scores masked to +inf where target != 0 (pads too)
    out_ref: (8, 128)    f32  per-(class, half) partial pair count, resident
                              across the i-block (reduction) grid axis
    """
    ii = pl.program_id(2)

    @pl.when(ii == 0)
    def _init():
        out_ref[...] = jnp.zeros_like(out_ref)

    n_j = n_pad // tj
    n_is = ti // 8
    inner_unroll = 4 if n_j % 4 == 0 else (2 if n_j % 2 == 0 else 1)

    def i_body(k, acc_i):
        i0 = pl.multiple_of(k * 8, 8)
        sc = col_ref[pl.ds(i0, 8), :]                          # (8, 1) sublanes

        def j_body(t, acc_j):
            j0 = pl.multiple_of(t * tj, tj)
            sr = row_ref[:, pl.ds(j0, tj)]                     # (1, tj) lanes
            gt = sc > sr                                       # (8, tj)
            eq = sc == sr
            # {1, 0.5, 0} per pair; the pos_i/neg_j weights are already folded
            # into the +/-inf masking, so no per-pair multiply is needed.
            cmp = jnp.where(gt, 1.0, jnp.where(eq, 0.5, 0.0))
            # Fold the slab onto one (8,128) vreg with lane-tile-aligned adds
            # (pure VALU; no XLU shuffles, no VMEM round trip).
            part = cmp[:, 0:128]
            for blk in range(1, tj // 128):
                part = part + cmp[:, blk * 128:(blk + 1) * 128]
            return acc_j + part

        return jax.lax.fori_loop(0, n_j, j_body, acc_i, unroll=inner_unroll)

    acc = jax.lax.fori_loop(0, n_is, i_body, jnp.zeros((8, 128), jnp.float32))
    out_ref[...] += acc


def auc_pallas(pred, target):
    """pred, target: (num_samples, num_classes). Returns scalar mean AUC (f32)."""
    n, c = pred.shape
    ti = 256                                   # i-block (sublane axis) per grid step
    n_pad = _round_up(max(n, 1), 2 * ti)       # 2*: even split over the "half" axis
    tj = 1024 if n_pad % 1024 == 0 else 512    # in-kernel lane-chunk width
    n_half = n_pad // (2 * ti)

    pred = pred.astype(jnp.float32)
    tgt = target.astype(jnp.float32)
    is_pos = tgt == 1.0
    is_neg = tgt == 0.0

    # Fold pair weights into the operands: non-positive "i" scores -> -inf,
    # non-negative "j" scores -> +inf, so every cross/pad term compares to 0.
    # (Assumes finite logits, as the sigmoid + sklearn reference effectively does.)
    neg_inf = float("-inf")
    pos_inf = float("inf")
    col = jnp.where(is_pos, pred, neg_inf).T                    # (C, N)
    row = jnp.where(is_neg, pred, pos_inf).T                    # (C, N)
    col = jnp.pad(col, ((0, 0), (0, n_pad - n)), constant_values=neg_inf)
    row = jnp.pad(row, ((0, 0), (0, n_pad - n)), constant_values=pos_inf)
    col_in = col[:, :, None]                                    # (C, N_pad, 1)
    row_in = row[:, None, :]                                    # (C, 1, N_pad)

    grid = (c, 2, n_half)

    # 2 x resident row + 2 x streamed col block + out blocks + slack.
    vmem_limit = int(min(64 * 1024 * 1024,
                         max(16 * 1024 * 1024,
                             2 * 8 * n_pad * 4 + 2 * ti * 128 * 4 + (4 << 20))))

    partial_counts = pl.pallas_call(
        functools.partial(_auc_pairs_kernel, ti=ti, tj=tj, n_pad=n_pad),
        out_shape=jax.ShapeDtypeStruct((c, 2, 8, 128), jnp.float32),
        grid_spec=pltpu.PrefetchScalarGridSpec(
            num_scalar_prefetch=0,
            grid=grid,
            in_specs=[
                # Streamed sublane-layout score column block of this class.
                pl.BlockSpec((None, ti, 1),
                             lambda ci, hi, ii: (ci, hi * n_half + ii, 0)),
                # Lane-dense score row, resident per class (block index constant
                # over hi/ii -> fetched once per class; default double-buffering
                # lets the next class' row prefetch overlap current compute).
                pl.BlockSpec((None, 1, n_pad),
                             lambda ci, hi, ii: (ci, 0, 0)),
            ],
            out_specs=pl.BlockSpec((None, None, 8, 128),
                                   lambda ci, hi, ii: (ci, hi, 0, 0)),
        ),
        compiler_params=pltpu.CompilerParams(
            dimension_semantics=("parallel", "parallel", "arbitrary"),
            vmem_limit_bytes=vmem_limit),
    )(col_in, row_in)

    numer = jnp.sum(partial_counts, axis=(1, 2, 3))              # (C,)
    n_pos = jnp.sum(is_pos, axis=0).astype(jnp.float32)          # (C,)
    n_neg = jnp.sum(is_neg, axis=0).astype(jnp.float32)
    denom = n_pos * n_neg
    # Degenerate class (only one label value) -> 0.5, like the reference's
    # except-ValueError path.
    auc = jnp.where(denom > 0.0, numer / jnp.maximum(denom, 1.0),
                    jnp.float32(0.5))
    return jnp.mean(auc)


def _auc_ref_numpy(pred, target):
    """Pure numpy reference (Mann-Whitney form of sigmoid + roc_auc_score)."""
    p_all = np.asarray(jax.nn.sigmoid(pred), dtype=np.float64)
    t_all = np.asarray(target, dtype=np.float64)
    c = p_all.shape[1]
    total = 0.0
    for idx in range(c):
        p = p_all[:, idx]
        t = t_all[:, idx]
        pos = p[t == 1.0]
        neg = p[t == 0.0]
        if pos.size == 0 or neg.size == 0:
            total += 0.5
            continue
        gt = (pos[:, None] > neg[None, :]).sum()
        eq = (pos[:, None] == neg[None, :]).sum()
        total += (gt + 0.5 * eq) / (pos.size * neg.size)
    return total / c


if __name__ == "__main__":
    key = jax.random.PRNGKey(0)
    k1, k2 = jax.random.split(key)

    num_samples, num_classes = 16, 4
    pred = jax.random.normal(k1, (num_samples, num_classes), dtype=jnp.float32)
    target = jax.random.bernoulli(
        k2, p=0.5, shape=(num_samples, num_classes)).astype(jnp.float32)

    out = auc_pallas(pred, target)
    out = jax.block_until_ready(out)

    ref = _auc_ref_numpy(pred, target)
    assert np.allclose(np.asarray(out), ref, atol=1e-5), (out, ref)
    print("KERNEL_OK")
</pallas_src>

<mosaic_0001>
module attributes {stable_mosaic.version = 11 : i64} {
  func.func @_auc_pairs_kernel(%arg0: i32, %arg1: i32, %arg2: i32, %arg3: memref<1x256x1xf32, #tpu.memory_space<vmem>>, %arg4: memref<1x1x512xf32, #tpu.memory_space<vmem>>, %arg5: memref<1x1x8x128xf32, #tpu.memory_space<vmem>>) attributes {dimension_semantics = [#tpu.dimension_semantics<parallel>, #tpu.dimension_semantics<parallel>, #tpu.dimension_semantics<arbitrary>], iteration_bounds = array<i64: 4, 2, 1>, scalar_prefetch = 0 : i64, scratch_operands = 0 : i64, tpu.core_type = #tpu.core_type<tc>, window_params = [{transform_indices = @transform_0, window_bounds = array<i64: 1, 256, 1>}, {transform_indices = @transform_1, window_bounds = array<i64: 1, 1, 512>}, {transform_indices = @transform_2, window_bounds = array<i64: 1, 1, 8, 128>}]} {
    %c0_i32 = arith.constant 0 : i32
    %0 = arith.cmpi eq, %arg2, %c0_i32 : i32
    %1 = arith.extui %0 : i1 to i32
    %c0_i32_0 = arith.constant 0 : i32
    %2 = arith.cmpi ne, %1, %c0_i32_0 : i32
    scf.if %2 {
      %cst_10 = arith.constant 0.000000e+00 : f32
      %12 = vector.broadcast %cst_10 : f32 to vector<8x128xf32>
      %c0_11 = arith.constant 0 : index
      %c0_12 = arith.constant 0 : index
      %c0_13 = arith.constant 0 : index
      %c0_14 = arith.constant 0 : index
      %13 = vector.load %arg5[%c0_11, %c0_12, %c0_13, %c0_14] : memref<1x1x8x128xf32, #tpu.memory_space<vmem>>, vector<1x1x8x128xf32>
      %14 = vector.shape_cast %13 : vector<1x1x8x128xf32> to vector<8x128xf32>
      %15 = vector.shape_cast %12 : vector<8x128xf32> to vector<1x1x8x128xf32>
      tpu.vector_store %arg5[%c0_11, %c0_12, %c0_13, %c0_14], %15 {strides = array<i32>} : memref<1x1x8x128xf32, #tpu.memory_space<vmem>>, vector<1x1x8x128xf32>,
    } else {
    }
    %cst = arith.constant 0.000000e+00 : f32
    %3 = vector.broadcast %cst : f32 to vector<8x128xf32>
    %c0_i32_1 = arith.constant 0 : i32
    %c32_i32 = arith.constant 32 : i32
    %4 = arith.addi %c0_i32_1, %c32_i32 : i32
    %c1_i32 = arith.constant 1 : i32
    %5 = scf.for %arg6 = %c0_i32_1 to %4 step %c1_i32 iter_args(%arg7 = %3) -> (vector<8x128xf32>)  : i32 {
      %c8_i32 = arith.constant 8 : i32
      %12 = arith.muli %arg6, %c8_i32 : i32
      %13 = tpu.assume_multiple %12, 8 : i32
      %c0_10 = arith.constant 0 : index
      %14 = arith.index_cast %13 : i32 to index
      %c0_11 = arith.constant 0 : index
      %15 = vector.load %arg3[%c0_10, %14, %c0_11] : memref<1x256x1xf32, #tpu.memory_space<vmem>>, vector<1x8x1xf32>
      %16 = vector.shape_cast %15 : vector<1x8x1xf32> to vector<8x1xf32>
      %c0_i32_12 = arith.constant 0 : i32
      %c512_i32 = arith.constant 512 : i32
      %17 = arith.muli %c0_i32_12, %c512_i32 : i32
      %18 = tpu.assume_multiple %17, 512 : i32
      %c0_13 = arith.constant 0 : index
      %c0_14 = arith.constant 0 : index
      %19 = arith.index_cast %18 : i32 to index
      %20 = vector.load %arg4[%c0_13, %c0_14, %19] : memref<1x1x512xf32, #tpu.memory_space<vmem>>, vector<1x1x512xf32>
      %21 = vector.shape_cast %20 : vector<1x1x512xf32> to vector<1x512xf32>
      %22 = vector.broadcast %16 : vector<8x1xf32> to vector<8x512xf32>
      %23 = vector.broadcast %21 : vector<1x512xf32> to vector<8x512xf32>
      %24 = arith.cmpf ogt, %22, %23 : vector<8x512xf32>
      %25 = vector.broadcast %16 : vector<8x1xf32> to vector<8x512xf32>
      %26 = vector.broadcast %21 : vector<1x512xf32> to vector<8x512xf32>
      %27 = arith.cmpf oeq, %25, %26 : vector<8x512xf32>
      %cst_15 = arith.constant 5.000000e-01 : f32
      %cst_16 = arith.constant 0.000000e+00 : f32
      %28 = vector.broadcast %cst_15 : f32 to vector<8x512xf32>
      %29 = vector.broadcast %cst_16 : f32 to vector<8x512xf32>
      %30 = arith.select %27, %28, %29 : vector<8x512xi1>, vector<8x512xf32>
      %cst_17 = arith.constant 1.000000e+00 : f32
      %31 = vector.broadcast %cst_17 : f32 to vector<8x512xf32>
      %32 = arith.select %24, %31, %30 : vector<8x512xi1>, vector<8x512xf32>
      %33 = vector.extract_strided_slice %32 {offsets = [0, 0], sizes = [8, 128], strides = [1, 1]} : vector<8x512xf32> to vector<8x128xf32>
      %34 = vector.extract_strided_slice %32 {offsets = [0, 128], sizes = [8, 128], strides = [1, 1]} : vector<8x512xf32> to vector<8x128xf32>
      %35 = arith.addf %33, %34 : vector<8x128xf32>
      %36 = vector.extract_strided_slice %32 {offsets = [0, 256], sizes = [8, 128], strides = [1, 1]} : vector<8x512xf32> to vector<8x128xf32>
      %37 = arith.addf %35, %36 : vector<8x128xf32>
      %38 = vector.extract_strided_slice %32 {offsets = [0, 384], sizes = [8, 128], strides = [1, 1]} : vector<8x512xf32> to vector<8x128xf32>
      %39 = arith.addf %37, %38 : vector<8x128xf32>
      %40 = arith.addf %arg7, %39 : vector<8x128xf32>
      %c1_i32_18 = arith.constant 1 : i32
      scf.yield %40 : vector<8x128xf32>
    }
    %c32_i32_2 = arith.constant 32 : i32
    %c0 = arith.constant 0 : index
    %c0_3 = arith.constant 0 : index
    %c0_4 = arith.constant 0 : index
    %c0_5 = arith.constant 0 : index
    %6 = vector.load %arg5[%c0, %c0_3, %c0_4, %c0_5] : memref<1x1x8x128xf32, #tpu.memory_space<vmem>>, vector<1x1x8x128xf32>
    %7 = vector.shape_cast %6 : vector<1x1x8x128xf32> to vector<8x128xf32>
    %8 = arith.addf %7, %5 : vector<8x128xf32>
    %c0_6 = arith.constant 0 : index
    %c0_7 = arith.constant 0 : index
    %c0_8 = arith.constant 0 : index
    %c0_9 = arith.constant 0 : index
    %9 = vector.load %arg5[%c0_6, %c0_7, %c0_8, %c0_9] : memref<1x1x8x128xf32, #tpu.memory_space<vmem>>, vector<1x1x8x128xf32>
    %10 = vector.shape_cast %9 : vector<1x1x8x128xf32> to vector<8x128xf32>
    %11 = vector.shape_cast %8 : vector<8x128xf32> to vector<1x1x8x128xf32>
    tpu.vector_store %arg5[%c0_6, %c0_7, %c0_8, %c0_9], %11 {strides = array<i32>} : memref<1x1x8x128xf32, #tpu.memory_space<vmem>>, vector<1x1x8x128xf32>,
    return
  }
  func.func @transform_0(%arg0: i32, %arg1: i32, %arg2: i32) -> (i32, i32, i32) {
    %c1_i32 = arith.constant 1 : i32
    %0 = arith.muli %arg1, %c1_i32 : i32
    %1 = arith.addi %0, %arg2 : i32
    %c0_i32 = arith.constant 0 : i32
    %c0_i32_0 = arith.constant 0 : i32
    return %arg0, %1, %c0_i32 : i32, i32, i32
  }
  func.func @transform_1(%arg0: i32, %arg1: i32, %arg2: i32) -> (i32, i32, i32) {
    %c0_i32 = arith.constant 0 : i32
    %c0_i32_0 = arith.constant 0 : i32
    %c0_i32_1 = arith.constant 0 : i32
    return %arg0, %c0_i32, %c0_i32_0 : i32, i32, i32
  }
  func.func @transform_2(%arg0: i32, %arg1: i32, %arg2: i32) -> (i32, i32, i32, i32) {
    %c0_i32 = arith.constant 0 : i32
    %c0_i32_0 = arith.constant 0 : i32
    %c0_i32_1 = arith.constant 0 : i32
    return %arg0, %arg1, %c0_i32, %c0_i32_0 : i32, i32, i32, i32
  }
}

</mosaic_0001>

<llo_original>
// kernel: tpu_custom_call.1
$region0: #{tpu_custom_call.1}
  #allocation0 [shape = 'u32[]', space=smem, size = 0x4, offset = 0x4, fixed_abs, tag = 'smem constant byte address 0x4 - core index']
  #allocation1 [shape = 'u32[144,128]{1,0:T(1,128)}', space=vmem, size = 0x12000, scoped, tag = 'internal scratch']
  %s0 = inlined_call_operand.vmem [shape: f32[4,512,1], index: 0, kind: input, shape index: {}]
  %s1 = inlined_call_operand.vmem [shape: f32[4,1,512], index: 1, kind: input, shape index: {}]
  %s2 = inlined_call_operand.hbm [shape: f32[4,2,8,128], index: 2, kind: output, shape index: {}]
  %s3 = sld [smem:[#allocation0]]
  $region52: #{tpu_custom_call.1} parent=0
    _
  %s5 = ssub.s32 1, %s3
  %s6 = scalar_select 0, %s5, %s3
  $region1: #{tpu_custom_call.1} parent=0
    #allocation2 [shape = 'u8[8192]{0}', space=vmem, size = 0x2000, scoped, tag = 'output window, operand 0']
    #allocation3 [shape = 's32[2]{0}', space=sflag, size = 0x8, scoped, tag = 'scoped memory for tpu_custom_call.1']
    %7 = vsyncpa [#allocation3], 0
    %s8 = scalar_lea.sflag [#allocation3], 1
    %9 = vsyncpa %s8, 0
    loop: start=0, step=1, limit=10
    $region2: #{tpu_custom_call.1} parent=1 // loop_pre_header
      _
    $region3: #{tpu_custom_call.1} parent=1 // loop_header
      %s11 = sphi 0, %s15
      %p12 = scmp.ge.s32.totalorder %s11, 10
      %s18 = sphi 0, %s37
      %s19 = sphi 0, %s33
      %s20 = sphi 0, %s29
      %s21 = sphi 0, %s18
      %s22 = sphi 0, %s19
      %s23 = sphi 0, %s20
      %s24 = sphi 0, %s21
      %s25 = sphi 0, %s22
      %s26 = sphi 0, %s23
      %s44 = sphi 0, %s46
      %s47 = sphi 0, %s44
      %s48 = sphi 0, %s47
      %s64 = sphi 0, %s48
      %s70 = sphi 0, %s72
      %s73 = sphi 0, %s70
      %s74 = sphi 0, %s73
      %s90 = sphi 0, %s74
      %s98 = sphi 0, %s100
      %s101 = sphi 0, %s98
      %s102 = sphi 0, %s101
      %s118 = sphi 0, %s102
    $region4: #{tpu_custom_call.1} parent=1 // loop_header_branch
      %14 = sbr.rel (%p12) target = $region8
    $region5: #{tpu_custom_call.1} parent=1 // loop_body
      %s16 = ssub.s32 %s11, 1
      %s17 = ssub.s32 %s11, 2
      %s27 = sadd.s32 1, %s20
      %p28 = scmp.ge.s32.totalorder %s27, 1
      %s29 = scalar_select %p28, 0, %s27
      %s30 = sadd.s32 1, %s19
      %s31 = scalar_select %p28, %s30, %s19
      %p32 = scmp.ge.s32.totalorder %s31, 2
      %s33 = scalar_select %p32, 0, %s31
      %s34 = sadd.s32 1, %s18
      %s35 = scalar_select %p32, %s34, %s18
      %p36 = scmp.ge.s32.totalorder %s35, 4
      %s37 = scalar_select %p36, 0, %s35
      %s38 = sadd.s32 %s19, %s20
      %s39 = sadd.s32 %s33, %s29
      %s40 = ssub.s32 %s18, %s37
      %s41 = ssub.s32 %s38, %s39
      %s42 = sor.u32 %s40, %s41
      %p43 = scmp.eq.s32.totalorder %s42, 0
      %s45 = sadd.s32 %s44, 1
      %s46 = scalar_select %p43, %s44, %s45
      %p49 = pneg %p43
      %p50 = scmp.eq.s32.totalorder %s11, 7
      %p51 = por %p49, %p50
      %p52 = scmp.ne.s32.totalorder %s44, %s47
      %p53 = scmp.eq.s32.totalorder %s11, 0
      %p54 = por %p52, %p53
      %p55 = scmp.ne.s32.totalorder %s44, %s47
      %p56 = scmp.eq.s32.totalorder %s16, 7
      %p57 = por %p55, %p56
      %p58 = scmp.ne.s32.totalorder %s47, %s48
      %p59 = scmp.eq.s32.totalorder %s16, 0
      %p60 = por %p58, %p59
      %p61 = scmp.ne.s32.totalorder %s47, %s48
      %p62 = scmp.eq.s32.totalorder %s17, 7
      %p63 = por %p61, %p62
      %p65 = scmp.ne.s32.totalorder %s48, %s64
      %p66 = scmp.eq.s32.totalorder %s17, 0
      %p67 = por %p65, %p66
      %s68 = ssub.s32 %s18, %s37
      %p69 = scmp.eq.s32.totalorder %s68, 0
      %s71 = sadd.s32 %s70, 1
      %s72 = scalar_select %p69, %s70, %s71
      %p75 = pneg %p69
      %p76 = scmp.eq.s32.totalorder %s11, 7
      %p77 = por %p75, %p76
      %p78 = scmp.ne.s32.totalorder %s70, %s73
      %p79 = scmp.eq.s32.totalorder %s11, 0
      %p80 = por %p78, %p79
      %p81 = scmp.ne.s32.totalorder %s70, %s73
      %p82 = scmp.eq.s32.totalorder %s16, 7
      %p83 = por %p81, %p82
      %p84 = scmp.ne.s32.totalorder %s73, %s74
      %p85 = scmp.eq.s32.totalorder %s16, 0
      %p86 = por %p84, %p85
      %p87 = scmp.ne.s32.totalorder %s73, %s74
      %p88 = scmp.eq.s32.totalorder %s17, 7
      %p89 = por %p87, %p88
      %p91 = scmp.ne.s32.totalorder %s74, %s90
      %p92 = scmp.eq.s32.totalorder %s17, 0
      %p93 = por %p91, %p92
      %s94 = ssub.s32 %s18, %s37
      %s95 = ssub.s32 %s19, %s33
      %s96 = sor.u32 %s94, %s95
      %p97 = scmp.eq.s32.totalorder %s96, 0
      %s99 = sadd.s32 %s98, 1
      %s100 = scalar_select %p97, %s98, %s99
      %p103 = pneg %p97
      %p104 = scmp.eq.s32.totalorder %s11, 7
      %p105 = por %p103, %p104
      %p106 = scmp.ne.s32.totalorder %s98, %s101
      %p107 = scmp.eq.s32.totalorder %s11, 0
      %p108 = por %p106, %p107
      %p109 = scmp.ne.s32.totalorder %s98, %s101
      %p110 = scmp.eq.s32.totalorder %s16, 7
      %p111 = por %p109, %p110
      %p112 = scmp.ne.s32.totalorder %s101, %s102
      %p113 = scmp.eq.s32.totalorder %s16, 0
      %p114 = por %p112, %p113
      %p115 = scmp.ne.s32.totalorder %s101, %s102
      %p116 = scmp.eq.s32.totalorder %s17, 7
      %p117 = por %p115, %p116
      %p119 = scmp.ne.s32.totalorder %s102, %s118
      %p120 = scmp.eq.s32.totalorder %s17, 0
      %p121 = por %p119, %p120
      %p122 = scmp.le.s32.totalorder 1, %s11
      %p123 = scmp.lt.s32.totalorder %s11, 9
      %p124 = pnand %p122, %p123
      %p125 = pneg %p124
      // Predicated region
      $region9: #{tpu_custom_call.1} parent=5 // pred_check
        _
      $region10: #{tpu_custom_call.1} parent=5 // pred_check_branch
        %127 = sbr.rel (%p124) target = $region12
      $region11: #{tpu_custom_call.1} parent=5 // pred_region
        %s128 = ssub.s32 %s11, 1
      $region12: #{tpu_custom_call.1} parent=5 // pred_fallthru
        _
      %p129 = scmp.lt.s32.totalorder %s11, 8
      // Predicated region
      $region13: #{tpu_custom_call.1} parent=5 // pred_check
        %p130 = pneg %p129
      $region14: #{tpu_custom_call.1} parent=5 // pred_check_branch
        %132 = sbr.rel (%p130) target = $region16
      $region15: #{tpu_custom_call.1} parent=5 // pred_region
        // Predicated region
        $region17: #{tpu_custom_call.1} parent=15 // pred_check
          %p133 = pneg %p54
        $region18: #{tpu_custom_call.1} parent=15 // pred_check_branch
          %135 = sbr.rel (%p133) target = $region20
        $region19: #{tpu_custom_call.1} parent=15 // pred_region
          %s136 = sadd.s32 %s19, %s20
          %s137 = smul.u32 32, %s136
          %p138 = scmp.lt.s32.totalorder %s18, 3
          %s139 = scalar_select %p138, %s18, 3
          %p140 = scmp.lt.s32.totalorder %s137, 63
          %s141 = scalar_select %p140, %s137, 63
          %s142 = smul.addr %s139, 64
          %s143 = sadd.s32 %s141, %s142
          %s144 = smul.addr %s143, 8
          %s145 = scalar_lea.vmem %s0, %s144
          %s146 = sadd.s32 %s19, %s20
          %s147 = smul.u32 32, %s146
        $region20: #{tpu_custom_call.1} parent=15 // pred_fallthru
          _
        // Predicated region
        $region21: #{tpu_custom_call.1} parent=15 // pred_check
          %p148 = pneg %p80
        $region22: #{tpu_custom_call.1} parent=15 // pred_check_branch
          %150 = sbr.rel (%p148) target = $region24
        $region23: #{tpu_custom_call.1} parent=15 // pred_region
          %p151 = scmp.lt.s32.totalorder %s18, 3
          %s152 = scalar_select %p151, %s18, 3
          %s153 = smul.addr %s152, 4
          %s154 = scalar_lea.vmem %s1, %s153
        $region24: #{tpu_custom_call.1} parent=15 // pred_fallthru
          _
      $region16: #{tpu_custom_call.1} parent=5 // pred_fallthru
        _
      %p155 = scmp.le.s32.totalorder 1, %s11
      %p156 = scmp.lt.s32.totalorder %s11, 9
      %p157 = pnand %p155, %p156
      %p158 = pneg %p157
      // Predicated region
      $region25: #{tpu_custom_call.1} parent=5 // pred_check
        _
      $region26: #{tpu_custom_call.1} parent=5 // pred_check_branch
        %160 = sbr.rel (%p157) target = $region28
      $region27: #{tpu_custom_call.1} parent=5 // pred_region
        %s161 = ssub.s32 %s11, 1
        %s162 = sadd.s32 %s22, %s23
        %s163 = smul.u32 32, %s162
        %p164 = scmp.lt.s32.totalorder %s21, 3
        %s165 = scalar_select %p164, %s21, 3
        %p166 = scmp.lt.s32.totalorder %s163, 63
        %s167 = scalar_select %p166, %s163, 63
        %s168 = smul.addr %s165, 64
        %s169 = sadd.s32 %s167, %s168
        %s170 = smul.addr %s169, 8
        %s171 = scalar_lea.vmem %s0, %s170
        %p172 = pneg %p60
        %p173 = pneg %p57
        %p174 = scmp.lt.s32.totalorder %s21, 3
        %s175 = scalar_select %p174, %s21, 3
        %s176 = smul.addr %s175, 4
        %s177 = scalar_lea.vmem %s1, %s176
        %p178 = pneg %p86
        %p179 = pneg %p83
        %p180 = pneg %p114
        %p181 = pneg %p111
        %s182 = sand.u32 %s101, 1
        %s183 = scalar_lea.sflag [#allocation3], %s182
        %s184 = sand.u32 %s101, 1
        %s185 = smul.addr %s184, 8
        %s186 = scalar_lea.vmem [#allocation2], %s185
        %s187 = sadd.s32 %s22, %s23
        %s188 = smul.u32 32, %s187
        %p189 = scmp.lt.s32.totalorder %s21, 3
        %s190 = scalar_select %p189, %s21, 3
        %p191 = scmp.lt.s32.totalorder %s188, 63
        %s192 = scalar_select %p191, %s188, 63
        %s193 = smul.addr %s190, 64
        %s194 = sadd.s32 %s192, %s193
        %s195 = smul.addr %s194, 8
        %s196 = scalar_lea.vmem %s0, %s195
        %s197 = sadd.s32 %s22, %s23
        %s198 = smul.u32 32, %s197
        %p199 = scmp.lt.s32.totalorder %s21, 3
        %s200 = scalar_select %p199, %s21, 3
        %s201 = smul.addr %s200, 4
        %s202 = scalar_lea.vmem %s1, %s201
        %p203 = scmp.eq.s32.totalorder %s23, 0
        // Predicated region
        $region29: #{tpu_custom_call.1} parent=27 // pred_check
          %p204 = pneg %p203
        $region30: #{tpu_custom_call.1} parent=27 // pred_check_branch
          %206 = sbr.rel (%p204) target = $region32
        $region31: #{tpu_custom_call.1} parent=27 // pred_region
          %207 = vst [vmem:[%s186] sm:$0xff] 0.0
        $region32: #{tpu_custom_call.1} parent=27 // pred_fallthru
          _
        loop: start=0, step=1, limit=32
        $region33: #{tpu_custom_call.1} parent=27 // loop_pre_header
          _
        $region34: #{tpu_custom_call.1} parent=27 // loop_header
          %s209 = sphi 0, %s213
          %p210 = scmp.ge.s32.totalorder %s209, 32
          %v214 = vphi 0.0, %v264
        $region35: #{tpu_custom_call.1} parent=27 // loop_header_branch
          %212 = sbr.rel (%p210) target = $region39
        $region36: #{tpu_custom_call.1} parent=27 // loop_body
          %s215 = smul.u32 %s209, 8
          %s216 = scalar_lea.vmem %s196, %s215
          %v217 = vld [vmem:[%s216] sm:$0xff]
          %v218 = vld [vmem:[%s202] sm:$0xf]
          %220 = vset.pattern.permute.xlu0 0
          %221 = vperm.xlu0 %220, %v217
          %v222 = vpop.permute.xlu0 %221
          %v225 = vlaneseq
          %v226 = vshrl.u32 %v225, 7
          %v227 = vsub.s32 0, %v226
          %v228 = vrot.slane %v218, %v227
          %v229 = vlaneseq
          %v230 = vshrl.u32 %v229, 7
          %v231 = vsub.s32 1, %v230
          %v232 = vrot.slane %v218, %v231
          %v233 = vlaneseq
          %v234 = vshrl.u32 %v233, 7
          %v235 = vsub.s32 2, %v234
          %v236 = vrot.slane %v218, %v235
          %v237 = vlaneseq
          %v238 = vshrl.u32 %v237, 7
          %v239 = vsub.s32 3, %v238
          %v240 = vrot.slane %v218, %v239
          %vm245 = vcmp.gt.f32.partialorder %v222, %v228
          %vm246 = vcmp.gt.f32.partialorder %v222, %v232
          %vm247 = vcmp.gt.f32.partialorder %v222, %v236
          %vm248 = vcmp.gt.f32.partialorder %v222, %v240
          %vm249 = vcmp.eq.f32.partialorder %v222, %v228
          %vm250 = vcmp.eq.f32.partialorder %v222, %v232
          %vm251 = vcmp.eq.f32.partialorder %v222, %v236
          %vm252 = vcmp.eq.f32.partialorder %v222, %v240
          %v253 = vsel %vm249, 0.5, 0.0
          %v254 = vsel %vm250, 0.5, 0.0
          %v255 = vsel %vm251, 0.5, 0.0
          %v256 = vsel %vm252, 0.5, 0.0
          %v257 = vsel %vm245, 1.0, %v253
          %v258 = vsel %vm246, 1.0, %v254
          %v259 = vsel %vm247, 1.0, %v255
          %v260 = vsel %vm248, 1.0, %v256
          %v261 = vadd.f32 %v257, %v258
          %v262 = vadd.f32 %v261, %v259
          %v263 = vadd.f32 %v262, %v260
          %v264 = vadd.f32 %v214, %v263
        $region37: #{tpu_custom_call.1} parent=27 // loop_footer
          %s213 = sadd.s32 1, %s209
        $region38: #{tpu_custom_call.1} parent=27 // loop_footer_branch
          %208 = sbr.rel target = $region34
        $region39: #{tpu_custom_call.1} parent=27 // loop_exit
          _
        %v265 = vld [vmem:[%s186] sm:$0xff]
        %v266 = vadd.f32 %v265, %v214
        %267 = vst [vmem:[%s186] sm:$0xff] %v266
        %s268 = sand.u32 %s101, 1
        %s269 = scalar_lea.sflag [#allocation3], %s268
        %s270 = sand.u32 %s101, 1
        %s271 = smul.addr %s270, 8
        %s272 = scalar_lea.vmem [#allocation2], %s271
        // Predicated region
        $region40: #{tpu_custom_call.1} parent=27 // pred_check
          %p273 = pneg %p111
        $region41: #{tpu_custom_call.1} parent=27 // pred_check_branch
          %275 = sbr.rel (%p273) target = $region43
        $region42: #{tpu_custom_call.1} parent=27 // pred_region
          %s277 = ssub.s32 128, 128
          %278 = vsyncadd %s269, %s277
          %s279 = smul.addr %s21, 2
          %s280 = sadd.s32 %s22, %s279
          %s281 = smul.addr %s280, 128
          %s282 = scalar_lea.hbm %s2, %s281
          %s284 = sshll.u32 %s272, 4
          %s285 = int_to_ptr.vmem [resolvable:$true] %s284
          %287 = dma.vmem_to_hbm [thread:$0]  %s285, 128, %s282, %s269
        $region43: #{tpu_custom_call.1} parent=27 // pred_fallthru
          _
      $region28: #{tpu_custom_call.1} parent=5 // pred_fallthru
        _
      %p288 = scmp.le.s32.totalorder 2, %s11
      // Predicated region
      $region44: #{tpu_custom_call.1} parent=5 // pred_check
        %p289 = pneg %p288
      $region45: #{tpu_custom_call.1} parent=5 // pred_check_branch
        %291 = sbr.rel (%p289) target = $region47
      $region46: #{tpu_custom_call.1} parent=5 // pred_region
        %s292 = ssub.s32 %s11, 2
        // Predicated region
        $region48: #{tpu_custom_call.1} parent=46 // pred_check
          %p293 = pneg %p117
        $region49: #{tpu_custom_call.1} parent=46 // pred_check_branch
          %295 = sbr.rel (%p293) target = $region51
        $region50: #{tpu_custom_call.1} parent=46 // pred_region
          %s296 = sand.u32 %s102, 1
          %s297 = scalar_lea.sflag [#allocation3], %s296
          %s298 = sand.u32 %s102, 1
          %s299 = smul.addr %s298, 8
          %s300 = scalar_lea.vmem [#allocation2], %s299
          %301 = dma.done %s297, 128
        $region51: #{tpu_custom_call.1} parent=46 // pred_fallthru
          _
      $region47: #{tpu_custom_call.1} parent=5 // pred_fallthru
        _
    $region6: #{tpu_custom_call.1} parent=1 // loop_footer
      %s15 = sadd.s32 1, %s11
    $region7: #{tpu_custom_call.1} parent=1 // loop_footer_branch
      %10 = sbr.rel target = $region3
    $region8: #{tpu_custom_call.1} parent=1 // loop_exit
      _
    %302 = vsyncpa [#allocation3], 1
    %s303 = scalar_lea.sflag [#allocation3], 1
    %304 = vsyncpa %s303, 1

</llo_original>
